<compile_context>
chip_gen: v5e
topology: v5e:2x2
jax: 0.10.0
libtpu: 0.0.40
codegen_flags: <defaults>
</compile_context>

<pallas_src>
import jax
import jax.numpy as jnp
from jax import lax
from jax.experimental import pallas as pl
from jax.experimental.pallas import tpu as pltpu


def bottleneck_forward(x_nchw, w1, w2, w3, s1, b1, s2, b2, s3, b3):
    """x_nchw: (N, Cin, H, W) f32.  Weights in PyTorch OIHW layout:
    w1: (P, Cin, 1, 1), w2: (P, P, 3, 3), w3: (Cout, P, 1, 1).
    s*/b*: folded eval-mode BatchNorm scale/bias vectors, shape (C,)."""
    N, Cin, H, W = x_nchw.shape
    P = w1.shape[0]
    Cout = w3.shape[0]
    HW = H * W

    # ---- host-side prep: fold BN scale into conv weights, orient for
    # (C_out, C_in) x (C_in, HW) matmuls, cast weights to bf16 ----
    w1m = (s1[:, None] * w1[:, :, 0, 0]).astype(jnp.bfloat16)        # (P, Cin)
    w2m = (s2[:, None, None, None] * w2)                             # (P, P, 3, 3) OIHW
    w2m = jnp.transpose(w2m, (0, 2, 3, 1)).reshape(P, 9 * P).astype(jnp.bfloat16)
    w3m = (s3[:, None] * w3[:, :, 0, 0]).astype(jnp.bfloat16)        # (Cout, P)
    b1c = b1[:, None].astype(jnp.float32)                            # (P, 1)
    b2c = b2[:, None].astype(jnp.float32)                            # (P, 1)
    b3c = b3[:, None].astype(jnp.float32)                            # (Cout, 1)

    xt = x_nchw.reshape(N, Cin, HW)                                  # lane-dense I/O

    def kernel(x_ref, w1_ref, w2_ref, w3_ref, b1_ref, b2_ref, b3_ref, out_ref):
        x = x_ref[0]                                            # (Cin, HW) f32

        # ---- conv1 (1x1) + bn1 + relu: one MXU matmul, spatial in lanes ----
        h1 = jnp.dot(w1_ref[...], x.astype(jnp.bfloat16),
                     preferred_element_type=jnp.float32)        # (P, HW) f32
        h1 = jnp.maximum(h1 + b1_ref[...], 0.0)

        # ---- conv2 (3x3, stride 1, pad 1) + bn2 + relu ----
        # In-register im2col: 9 lane-shifted copies of h1 (ends zero-filled,
        # W-border wrap masked), concatenated to (9P, HW), one K=9P matmul.
        col = lax.broadcasted_iota(jnp.int32, (P, HW), 1) % W
        not_left = col >= 1              # source column w-1 is in-image
        not_right = col <= W - 2         # source column w+1 is in-image

        taps = []
        for dy in (-1, 0, 1):
            for dx in (-1, 0, 1):
                off = dy * W + dx
                if off == 0:
                    sh = h1
                elif off > 0:
                    sh = jnp.concatenate(
                        [h1[:, off:], jnp.zeros((P, off), h1.dtype)], axis=1)
                else:
                    sh = jnp.concatenate(
                        [jnp.zeros((P, -off), h1.dtype), h1[:, :off]], axis=1)
                if dx == -1:
                    sh = jnp.where(not_left, sh, 0.0)
                elif dx == 1:
                    sh = jnp.where(not_right, sh, 0.0)
                taps.append(sh)
        patches = jnp.concatenate(taps, axis=0).astype(jnp.bfloat16)   # (9P, HW)

        h2 = jnp.dot(w2_ref[...], patches,
                     preferred_element_type=jnp.float32)        # (P, HW) f32
        h2 = jnp.maximum(h2 + b2_ref[...], 0.0)

        # ---- conv3 (1x1) + bn3 ----
        h3 = jnp.dot(w3_ref[...], h2.astype(jnp.bfloat16),
                     preferred_element_type=jnp.float32)        # (Cout, HW) f32
        h3 = h3 + b3_ref[...]

        # ---- residual add (downsample is None -> residual = x) + final relu.
        # Re-read x here: exact f32 residual, short live range. ----
        out_ref[0] = jnp.maximum(h3 + x_ref[0], 0.0)

    const = lambda shape: pl.BlockSpec(shape, lambda n: (0,) * len(shape))

    out = pl.pallas_call(
        kernel,
        out_shape=jax.ShapeDtypeStruct((N, Cout, HW), jnp.float32),
        grid=(N,),
        in_specs=[
            pl.BlockSpec((1, Cin, HW), lambda n: (n, 0, 0)),    # x, per image
            const((P, Cin)),                                    # w1 (bf16, BN-scaled)
            const((P, 9 * P)),                                  # w2 (bf16, BN-scaled)
            const((Cout, P)),                                   # w3 (bf16, BN-scaled)
            const((P, 1)), const((P, 1)), const((Cout, 1)),     # b1, b2, b3 (f32)
        ],
        out_specs=pl.BlockSpec((1, Cout, HW), lambda n: (n, 0, 0)),
        compiler_params=pltpu.CompilerParams(
            dimension_semantics=("parallel",)),
    )(xt, w1m, w2m, w3m, b1c, b2c, b3c)

    return out.reshape(N, Cout, H, W)


def fold_bn(gamma, beta, mean, var, eps=1e-5):
    scale = gamma / jnp.sqrt(var + eps)
    bias = beta - mean * scale
    return scale, bias


def reference_forward(x, w1, w2, w3, s1, b1, s2, b2, s3, b3):
    dn = ('NCHW', 'OIHW', 'NCHW')
    hp = jax.lax.Precision.HIGHEST
    bn = lambda h, s, b: h * s[None, :, None, None] + b[None, :, None, None]
    h = lax.conv_general_dilated(x, w1, (1, 1), 'VALID',
                                 dimension_numbers=dn, precision=hp)
    h = jnp.maximum(bn(h, s1, b1), 0.0)
    h = lax.conv_general_dilated(h, w2, (1, 1), ((1, 1), (1, 1)),
                                 dimension_numbers=dn, precision=hp)
    h = jnp.maximum(bn(h, s2, b2), 0.0)
    h = lax.conv_general_dilated(h, w3, (1, 1), 'VALID',
                                 dimension_numbers=dn, precision=hp)
    h = bn(h, s3, b3)
    return jnp.maximum(h + x, 0.0)


if __name__ == "__main__":
    key = jax.random.PRNGKey(0)
    N, H, W = 2, 16, 16
    inplanes, planes, expansion = 8, 4, 2
    Cout = planes * expansion       # == inplanes, so residual needs no downsample

    ks = jax.random.split(key, 16)
    # input, PyTorch NCHW
    x = jax.random.normal(ks[0], (N, inplanes, H, W), jnp.float32)

    # conv weights in PyTorch OIHW layout (deterministic synthetic init)
    w1 = jax.random.normal(ks[1], (planes, inplanes, 1, 1), jnp.float32) * 0.2
    w2 = jax.random.normal(ks[2], (planes, planes, 3, 3), jnp.float32) * 0.2
    w3 = jax.random.normal(ks[3], (Cout, planes, 1, 1), jnp.float32) * 0.2

    # eval-mode BatchNorm running stats (synthetic, deterministic)
    def bn_params(kg, kb, km, kv, c):
        gamma = jax.random.normal(kg, (c,), jnp.float32) * 0.1 + 1.0
        beta = jax.random.normal(kb, (c,), jnp.float32) * 0.1
        mean = jax.random.normal(km, (c,), jnp.float32) * 0.1
        var = jnp.abs(jax.random.normal(kv, (c,), jnp.float32)) * 0.1 + 0.9
        return gamma, beta, mean, var

    s1, b1 = fold_bn(*bn_params(ks[4], ks[5], ks[6], ks[7], planes))
    s2, b2 = fold_bn(*bn_params(ks[8], ks[9], ks[10], ks[11], planes))
    s3, b3 = fold_bn(*bn_params(ks[12], ks[13], ks[14], ks[15], Cout))

    out = bottleneck_forward(x, w1, w2, w3, s1, b1, s2, b2, s3, b3)
    out = jax.block_until_ready(out)

    ref = reference_forward(x, w1, w2, w3, s1, b1, s2, b2, s3, b3)
    assert out.shape == (N, Cout, H, W)
    err = jnp.max(jnp.abs(out - ref))
    # bf16 matmul inputs -> tolerance a bit looser than pure-f32
    assert jnp.allclose(out, ref, rtol=3e-2, atol=3e-2), f"max_abs_err={float(err)}"

    print("KERNEL_OK")
</pallas_src>

<mosaic_0001>
module attributes {stable_mosaic.version = 11 : i64} {
  func.func @kernel(%arg0: i32, %arg1: memref<1x8x256xf32, #tpu.memory_space<vmem>>, %arg2: memref<4x8xbf16, #tpu.memory_space<vmem>>, %arg3: memref<4x36xbf16, #tpu.memory_space<vmem>>, %arg4: memref<8x4xbf16, #tpu.memory_space<vmem>>, %arg5: memref<4x1xf32, #tpu.memory_space<vmem>>, %arg6: memref<4x1xf32, #tpu.memory_space<vmem>>, %arg7: memref<8x1xf32, #tpu.memory_space<vmem>>, %arg8: memref<1x8x256xf32, #tpu.memory_space<vmem>>) attributes {dimension_semantics = [#tpu.dimension_semantics<parallel>], iteration_bounds = array<i64: 2>, scalar_prefetch = 0 : i64, scratch_operands = 0 : i64, tpu.core_type = #tpu.core_type<tc>, window_params = [{transform_indices = @transform_0, window_bounds = array<i64: 1, 8, 256>}, {pipeline_mode = #tpu.pipeline_mode<synchronous>, transform_indices = @transform_1, window_bounds = array<i64: 4, 8>}, {pipeline_mode = #tpu.pipeline_mode<synchronous>, transform_indices = @transform_2, window_bounds = array<i64: 4, 36>}, {pipeline_mode = #tpu.pipeline_mode<synchronous>, transform_indices = @transform_3, window_bounds = array<i64: 8, 4>}, {pipeline_mode = #tpu.pipeline_mode<synchronous>, transform_indices = @transform_4, window_bounds = array<i64: 4, 1>}, {pipeline_mode = #tpu.pipeline_mode<synchronous>, transform_indices = @transform_5, window_bounds = array<i64: 4, 1>}, {pipeline_mode = #tpu.pipeline_mode<synchronous>, transform_indices = @transform_6, window_bounds = array<i64: 8, 1>}, {transform_indices = @transform_7, window_bounds = array<i64: 1, 8, 256>}]} {
    %c0 = arith.constant 0 : index
    %c0_0 = arith.constant 0 : index
    %c0_1 = arith.constant 0 : index
    %0 = vector.load %arg1[%c0, %c0_0, %c0_1] : memref<1x8x256xf32, #tpu.memory_space<vmem>>, vector<1x8x256xf32>
    %1 = vector.shape_cast %0 : vector<1x8x256xf32> to vector<8x256xf32>
    %c0_2 = arith.constant 0 : index
    %c0_3 = arith.constant 0 : index
    %2 = vector.load %arg2[%c0_2, %c0_3] : memref<4x8xbf16, #tpu.memory_space<vmem>>, vector<4x8xbf16>
    %3 = arith.truncf %1 : vector<8x256xf32> to vector<8x256xbf16>
    %cst = arith.constant dense<0.000000e+00> : vector<4x256xf32>
    %4 = tpu.matmul %2, %3, %cst {dimension_numbers = #tpu.dot_dimension_numbers<[1], [0], [0], [1], [0, 0, 1, 1], [], []>} : vector<4x8xbf16>, vector<8x256xbf16>, vector<4x256xf32> -> vector<4x256xf32>
    %c0_4 = arith.constant 0 : index
    %c0_5 = arith.constant 0 : index
    %5 = vector.load %arg5[%c0_4, %c0_5] : memref<4x1xf32, #tpu.memory_space<vmem>>, vector<4x1xf32>
    %6 = vector.broadcast %5 : vector<4x1xf32> to vector<4x256xf32>
    %7 = arith.addf %4, %6 : vector<4x256xf32>
    %cst_6 = arith.constant 0.000000e+00 : f32
    %8 = vector.broadcast %cst_6 : f32 to vector<4x256xf32>
    %9 = arith.maximumf %7, %8 : vector<4x256xf32>
    %10 = tpu.iota {dimensions = array<i32: 1>} : vector<4x256xi32>
    %c16_i32 = arith.constant 16 : i32
    %c0_i32 = arith.constant 0 : i32
    %11 = arith.cmpi eq, %c16_i32, %c0_i32 : i32
    %c1_i32 = arith.constant 1 : i32
    %12 = arith.select %11, %c1_i32, %c16_i32 : i32
    %13 = vector.broadcast %12 : i32 to vector<4x256xi32>
    %14 = arith.remsi %10, %13 : vector<4x256xi32>
    %c0_i32_7 = arith.constant 0 : i32
    %15 = vector.broadcast %c0_i32_7 : i32 to vector<4x256xi32>
    %16 = arith.cmpi ne, %14, %15 : vector<4x256xi32>
    %c0_i32_8 = arith.constant 0 : i32
    %17 = vector.broadcast %c0_i32_8 : i32 to vector<4x256xi32>
    %18 = arith.cmpi slt, %14, %17 : vector<4x256xi32>
    %c0_i32_9 = arith.constant 0 : i32
    %19 = arith.cmpi slt, %12, %c0_i32_9 : i32
    %20 = vector.broadcast %19 : i1 to vector<4x256xi1>
    %21 = vector.broadcast %20 : vector<4x256xi1> to vector<4x256xi1>
    %22 = arith.xori %18, %21 : vector<4x256xi1>
    %23 = arith.andi %22, %16 : vector<4x256xi1>
    %24 = vector.broadcast %12 : i32 to vector<4x256xi32>
    %25 = arith.addi %14, %24 : vector<4x256xi32>
    %26 = arith.select %23, %25, %14 : vector<4x256xi1>, vector<4x256xi32>
    %c1_i32_10 = arith.constant 1 : i32
    %27 = vector.broadcast %c1_i32_10 : i32 to vector<4x256xi32>
    %28 = arith.cmpi sge, %26, %27 : vector<4x256xi32>
    %c14_i32 = arith.constant 14 : i32
    %29 = vector.broadcast %c14_i32 : i32 to vector<4x256xi32>
    %30 = arith.cmpi sle, %26, %29 : vector<4x256xi32>
    %cst_11 = arith.constant 0.000000e+00 : f32
    %31 = vector.broadcast %cst_11 : f32 to vector<4x17xf32>
    %32 = vector.extract_strided_slice %9 {offsets = [0, 0], sizes = [4, 239], strides = [1, 1]} : vector<4x256xf32> to vector<4x239xf32>
    %33 = tpu.concatenate %31, %32 in 1 : vector<4x17xf32>, vector<4x239xf32> -> vector<4x256xf32>
    %cst_12 = arith.constant 0.000000e+00 : f32
    %34 = vector.broadcast %cst_12 : f32 to vector<4x256xf32>
    %35 = arith.select %28, %33, %34 : vector<4x256xi1>, vector<4x256xf32>
    %cst_13 = arith.constant 0.000000e+00 : f32
    %36 = vector.broadcast %cst_13 : f32 to vector<4x16xf32>
    %37 = vector.extract_strided_slice %9 {offsets = [0, 0], sizes = [4, 240], strides = [1, 1]} : vector<4x256xf32> to vector<4x240xf32>
    %38 = tpu.concatenate %36, %37 in 1 : vector<4x16xf32>, vector<4x240xf32> -> vector<4x256xf32>
    %cst_14 = arith.constant 0.000000e+00 : f32
    %39 = vector.broadcast %cst_14 : f32 to vector<4x15xf32>
    %40 = vector.extract_strided_slice %9 {offsets = [0, 0], sizes = [4, 241], strides = [1, 1]} : vector<4x256xf32> to vector<4x241xf32>
    %41 = tpu.concatenate %39, %40 in 1 : vector<4x15xf32>, vector<4x241xf32> -> vector<4x256xf32>
    %cst_15 = arith.constant 0.000000e+00 : f32
    %42 = vector.broadcast %cst_15 : f32 to vector<4x256xf32>
    %43 = arith.select %30, %41, %42 : vector<4x256xi1>, vector<4x256xf32>
    %cst_16 = arith.constant 0.000000e+00 : f32
    %44 = vector.broadcast %cst_16 : f32 to vector<4x1xf32>
    %45 = vector.extract_strided_slice %9 {offsets = [0, 0], sizes = [4, 255], strides = [1, 1]} : vector<4x256xf32> to vector<4x255xf32>
    %46 = tpu.concatenate %44, %45 in 1 : vector<4x1xf32>, vector<4x255xf32> -> vector<4x256xf32>
    %cst_17 = arith.constant 0.000000e+00 : f32
    %47 = vector.broadcast %cst_17 : f32 to vector<4x256xf32>
    %48 = arith.select %28, %46, %47 : vector<4x256xi1>, vector<4x256xf32>
    %49 = vector.extract_strided_slice %9 {offsets = [0, 1], sizes = [4, 255], strides = [1, 1]} : vector<4x256xf32> to vector<4x255xf32>
    %cst_18 = arith.constant 0.000000e+00 : f32
    %50 = vector.broadcast %cst_18 : f32 to vector<4x1xf32>
    %51 = tpu.concatenate %49, %50 in 1 : vector<4x255xf32>, vector<4x1xf32> -> vector<4x256xf32>
    %cst_19 = arith.constant 0.000000e+00 : f32
    %52 = vector.broadcast %cst_19 : f32 to vector<4x256xf32>
    %53 = arith.select %30, %51, %52 : vector<4x256xi1>, vector<4x256xf32>
    %54 = vector.extract_strided_slice %9 {offsets = [0, 15], sizes = [4, 241], strides = [1, 1]} : vector<4x256xf32> to vector<4x241xf32>
    %cst_20 = arith.constant 0.000000e+00 : f32
    %55 = vector.broadcast %cst_20 : f32 to vector<4x15xf32>
    %56 = tpu.concatenate %54, %55 in 1 : vector<4x241xf32>, vector<4x15xf32> -> vector<4x256xf32>
    %cst_21 = arith.constant 0.000000e+00 : f32
    %57 = vector.broadcast %cst_21 : f32 to vector<4x256xf32>
    %58 = arith.select %28, %56, %57 : vector<4x256xi1>, vector<4x256xf32>
    %59 = vector.extract_strided_slice %9 {offsets = [0, 16], sizes = [4, 240], strides = [1, 1]} : vector<4x256xf32> to vector<4x240xf32>
    %cst_22 = arith.constant 0.000000e+00 : f32
    %60 = vector.broadcast %cst_22 : f32 to vector<4x16xf32>
    %61 = tpu.concatenate %59, %60 in 1 : vector<4x240xf32>, vector<4x16xf32> -> vector<4x256xf32>
    %62 = vector.extract_strided_slice %9 {offsets = [0, 17], sizes = [4, 239], strides = [1, 1]} : vector<4x256xf32> to vector<4x239xf32>
    %cst_23 = arith.constant 0.000000e+00 : f32
    %63 = vector.broadcast %cst_23 : f32 to vector<4x17xf32>
    %64 = tpu.concatenate %62, %63 in 1 : vector<4x239xf32>, vector<4x17xf32> -> vector<4x256xf32>
    %cst_24 = arith.constant 0.000000e+00 : f32
    %65 = vector.broadcast %cst_24 : f32 to vector<4x256xf32>
    %66 = arith.select %30, %64, %65 : vector<4x256xi1>, vector<4x256xf32>
    %67 = tpu.concatenate %35, %38, %43, %48, %9, %53, %58, %61, %66 in 0 : vector<4x256xf32>, vector<4x256xf32>, vector<4x256xf32>, vector<4x256xf32>, vector<4x256xf32>, vector<4x256xf32>, vector<4x256xf32>, vector<4x256xf32>, vector<4x256xf32> -> vector<36x256xf32>
    %68 = arith.truncf %67 : vector<36x256xf32> to vector<36x256xbf16>
    %c0_25 = arith.constant 0 : index
    %c0_26 = arith.constant 0 : index
    %69 = vector.load %arg3[%c0_25, %c0_26] : memref<4x36xbf16, #tpu.memory_space<vmem>>, vector<4x36xbf16>
    %cst_27 = arith.constant dense<0.000000e+00> : vector<4x256xf32>
    %70 = tpu.matmul %69, %68, %cst_27 {dimension_numbers = #tpu.dot_dimension_numbers<[1], [0], [0], [1], [0, 0, 1, 1], [], []>} : vector<4x36xbf16>, vector<36x256xbf16>, vector<4x256xf32> -> vector<4x256xf32>
    %c0_28 = arith.constant 0 : index
    %c0_29 = arith.constant 0 : index
    %71 = vector.load %arg6[%c0_28, %c0_29] : memref<4x1xf32, #tpu.memory_space<vmem>>, vector<4x1xf32>
    %72 = vector.broadcast %71 : vector<4x1xf32> to vector<4x256xf32>
    %73 = arith.addf %70, %72 : vector<4x256xf32>
    %cst_30 = arith.constant 0.000000e+00 : f32
    %74 = vector.broadcast %cst_30 : f32 to vector<4x256xf32>
    %75 = arith.maximumf %73, %74 : vector<4x256xf32>
    %c0_31 = arith.constant 0 : index
    %c0_32 = arith.constant 0 : index
    %76 = vector.load %arg4[%c0_31, %c0_32] : memref<8x4xbf16, #tpu.memory_space<vmem>>, vector<8x4xbf16>
    %77 = arith.truncf %75 : vector<4x256xf32> to vector<4x256xbf16>
    %cst_33 = arith.constant dense<0.000000e+00> : vector<8x256xf32>
    %78 = tpu.matmul %76, %77, %cst_33 {dimension_numbers = #tpu.dot_dimension_numbers<[1], [0], [0], [1], [0, 0, 1, 1], [], []>} : vector<8x4xbf16>, vector<4x256xbf16>, vector<8x256xf32> -> vector<8x256xf32>
    %c0_34 = arith.constant 0 : index
    %c0_35 = arith.constant 0 : index
    %79 = vector.load %arg7[%c0_34, %c0_35] : memref<8x1xf32, #tpu.memory_space<vmem>>, vector<8x1xf32>
    %80 = vector.broadcast %79 : vector<8x1xf32> to vector<8x256xf32>
    %81 = arith.addf %78, %80 : vector<8x256xf32>
    %c0_36 = arith.constant 0 : index
    %c0_37 = arith.constant 0 : index
    %c0_38 = arith.constant 0 : index
    %82 = vector.load %arg1[%c0_36, %c0_37, %c0_38] : memref<1x8x256xf32, #tpu.memory_space<vmem>>, vector<1x8x256xf32>
    %83 = vector.shape_cast %82 : vector<1x8x256xf32> to vector<8x256xf32>
    %84 = arith.addf %81, %83 : vector<8x256xf32>
    %cst_39 = arith.constant 0.000000e+00 : f32
    %85 = vector.broadcast %cst_39 : f32 to vector<8x256xf32>
    %86 = arith.maximumf %84, %85 : vector<8x256xf32>
    %c0_40 = arith.constant 0 : index
    %c0_41 = arith.constant 0 : index
    %c0_42 = arith.constant 0 : index
    %87 = vector.load %arg8[%c0_40, %c0_41, %c0_42] : memref<1x8x256xf32, #tpu.memory_space<vmem>>, vector<1x8x256xf32>
    %88 = vector.shape_cast %87 : vector<1x8x256xf32> to vector<8x256xf32>
    %89 = vector.shape_cast %86 : vector<8x256xf32> to vector<1x8x256xf32>
    tpu.vector_store %arg8[%c0_40, %c0_41, %c0_42], %89 {strides = array<i32>} : memref<1x8x256xf32, #tpu.memory_space<vmem>>, vector<1x8x256xf32>,
    return
  }
  func.func @transform_0(%arg0: i32) -> (i32, i32, i32) {
    %c0_i32 = arith.constant 0 : i32
    %c0_i32_0 = arith.constant 0 : i32
    %c0_i32_1 = arith.constant 0 : i32
    return %arg0, %c0_i32, %c0_i32_0 : i32, i32, i32
  }
  func.func @transform_1(%arg0: i32) -> (i32, i32) {
    %c0_i32 = arith.constant 0 : i32
    %c0_i32_0 = arith.constant 0 : i32
    %c0_i32_1 = arith.constant 0 : i32
    return %c0_i32, %c0_i32_0 : i32, i32
  }
  func.func @transform_2(%arg0: i32) -> (i32, i32) {
    %c0_i32 = arith.constant 0 : i32
    %c0_i32_0 = arith.constant 0 : i32
    %c0_i32_1 = arith.constant 0 : i32
    return %c0_i32, %c0_i32_0 : i32, i32
  }
  func.func @transform_3(%arg0: i32) -> (i32, i32) {
    %c0_i32 = arith.constant 0 : i32
    %c0_i32_0 = arith.constant 0 : i32
    %c0_i32_1 = arith.constant 0 : i32
    return %c0_i32, %c0_i32_0 : i32, i32
  }
  func.func @transform_4(%arg0: i32) -> (i32, i32) {
    %c0_i32 = arith.constant 0 : i32
    %c0_i32_0 = arith.constant 0 : i32
    %c0_i32_1 = arith.constant 0 : i32
    return %c0_i32, %c0_i32_0 : i32, i32
  }
  func.func @transform_5(%arg0: i32) -> (i32, i32) {
    %c0_i32 = arith.constant 0 : i32
    %c0_i32_0 = arith.constant 0 : i32
    %c0_i32_1 = arith.constant 0 : i32
    return %c0_i32, %c0_i32_0 : i32, i32
  }
  func.func @transform_6(%arg0: i32) -> (i32, i32) {
    %c0_i32 = arith.constant 0 : i32
    %c0_i32_0 = arith.constant 0 : i32
    %c0_i32_1 = arith.constant 0 : i32
    return %c0_i32, %c0_i32_0 : i32, i32
  }
  func.func @transform_7(%arg0: i32) -> (i32, i32, i32) {
    %c0_i32 = arith.constant 0 : i32
    %c0_i32_0 = arith.constant 0 : i32
    %c0_i32_1 = arith.constant 0 : i32
    return %arg0, %c0_i32, %c0_i32_0 : i32, i32, i32
  }
}

</mosaic_0001>

<llo_original>
// kernel: tpu_custom_call.1
$region0: #{tpu_custom_call.1}
  #allocation0 [shape = 'u32[]', space=smem, size = 0x4, offset = 0x4, fixed_abs, tag = 'smem constant byte address 0x4 - core index']
  #allocation1 [shape = 'u32[72,128]{1,0:T(1,128)}', space=vmem, size = 0x9000, scoped, tag = 'internal scratch']
  %s0 = inlined_call_operand.hbm [shape: f32[2,8,256], index: 0, kind: input, shape index: {}]
  %s1 = inlined_call_operand.vmem [shape: bf16[4,8], index: 1, kind: input, shape index: {}]
  %s2 = inlined_call_operand.vmem [shape: bf16[4,36], index: 2, kind: input, shape index: {}]
  %s3 = inlined_call_operand.vmem [shape: bf16[8,4], index: 3, kind: input, shape index: {}]
  %s4 = inlined_call_operand.vmem [shape: f32[4,1], index: 4, kind: input, shape index: {}]
  %s5 = inlined_call_operand.vmem [shape: f32[4,1], index: 5, kind: input, shape index: {}]
  %s6 = inlined_call_operand.vmem [shape: f32[8,1], index: 6, kind: input, shape index: {}]
  %s7 = inlined_call_operand.hbm [shape: f32[2,8,256], index: 7, kind: output, shape index: {}]
  %s8 = sld [smem:[#allocation0]]
  $region65: #{tpu_custom_call.1} parent=0
    _
  %s10 = ssub.s32 1, %s8
  %s11 = scalar_select 0, %s10, %s8
  $region1: #{tpu_custom_call.1} parent=0
    #allocation2 [shape = 'u8[16384]{0}', space=vmem, size = 0x4000, scoped, tag = 'input window, operand 0']
    #allocation3 [shape = 's32[2]{0}', space=sflag, size = 0x8, scoped, tag = 'scoped memory for tpu_custom_call.1']
    #allocation4 [shape = 's32[2]{0}', space=sflag, size = 0x8, scoped, tag = 'scoped memory for tpu_custom_call.1']
    #allocation5 [shape = 'u8[16384]{0}', space=vmem, size = 0x4000, scoped, tag = 'output window, operand 0']
    %12 = vsyncpa [#allocation3], 0
    %s13 = scalar_lea.sflag [#allocation3], 1
    %14 = vsyncpa %s13, 0
    %15 = vsyncpa [#allocation4], 0
    %s16 = scalar_lea.sflag [#allocation4], 1
    %17 = vsyncpa %s16, 0
    loop: start=0, step=1, limit=4
    $region2: #{tpu_custom_call.1} parent=1 // loop_pre_header
      _
    $region3: #{tpu_custom_call.1} parent=1 // loop_header
      %s19 = sphi 0, %s23
      %p20 = scmp.ge.s32.totalorder %s19, 4
      %s29 = sphi 0, %s31
      %s32 = sphi 0, %s29
      %s33 = sphi 0, %s32
      %s49 = sphi 0, %s33
      %s53 = sphi 0, %s53
      %s55 = sphi 0, %s53
      %s56 = sphi 0, %s55
      %s70 = sphi 0, %s56
      %s74 = sphi 0, %s74
      %s76 = sphi 0, %s74
      %s77 = sphi 0, %s76
      %s91 = sphi 0, %s77
      %s95 = sphi 0, %s95
      %s97 = sphi 0, %s95
      %s98 = sphi 0, %s97
      %s112 = sphi 0, %s98
      %s116 = sphi 0, %s116
      %s118 = sphi 0, %s116
      %s119 = sphi 0, %s118
      %s133 = sphi 0, %s119
      %s137 = sphi 0, %s137
      %s139 = sphi 0, %s137
      %s140 = sphi 0, %s139
      %s154 = sphi 0, %s140
      %s158 = sphi 0, %s158
      %s160 = sphi 0, %s158
      %s161 = sphi 0, %s160
      %s175 = sphi 0, %s161
      %s181 = sphi 0, %s183
      %s184 = sphi 0, %s181
      %s185 = sphi 0, %s184
      %s201 = sphi 0, %s185
    $region4: #{tpu_custom_call.1} parent=1 // loop_header_branch
      %22 = sbr.rel (%p20) target = $region8
    $region5: #{tpu_custom_call.1} parent=1 // loop_body
      %s24 = ssub.s32 %s19, 1
      %s25 = ssub.s32 %s19, 2
      %s26 = sadd.s32 %s19, 1
      %s27 = ssub.s32 %s19, %s26
      %p28 = scmp.eq.s32.totalorder %s27, 0
      %s30 = sadd.s32 %s29, 1
      %s31 = scalar_select %p28, %s29, %s30
      %p34 = pneg %p28
      %p35 = scmp.eq.s32.totalorder %s19, 1
      %p36 = por %p34, %p35
      %p37 = scmp.ne.s32.totalorder %s29, %s32
      %p38 = scmp.eq.s32.totalorder %s19, 0
      %p39 = por %p37, %p38
      %p40 = scmp.ne.s32.totalorder %s29, %s32
      %p41 = scmp.eq.s32.totalorder %s24, 1
      %p42 = por %p40, %p41
      %p43 = scmp.ne.s32.totalorder %s32, %s33
      %p44 = scmp.eq.s32.totalorder %s24, 0
      %p45 = por %p43, %p44
      %p46 = scmp.ne.s32.totalorder %s32, %s33
      %p47 = scmp.eq.s32.totalorder %s25, 1
      %p48 = por %p46, %p47
      %p50 = scmp.ne.s32.totalorder %s33, %s49
      %p51 = scmp.eq.s32.totalorder %s25, 0
      %p52 = por %p50, %p51
      %s54 = sadd.s32 %s53, 1
      %p57 = scmp.eq.s32.totalorder %s19, 1
      %p58 = scmp.ne.s32.totalorder %s53, %s55
      %p59 = scmp.eq.s32.totalorder %s19, 0
      %p60 = por %p58, %p59
      %p61 = scmp.ne.s32.totalorder %s53, %s55
      %p62 = scmp.eq.s32.totalorder %s24, 1
      %p63 = por %p61, %p62
      %p64 = scmp.ne.s32.totalorder %s55, %s56
      %p65 = scmp.eq.s32.totalorder %s24, 0
      %p66 = por %p64, %p65
      %p67 = scmp.ne.s32.totalorder %s55, %s56
      %p68 = scmp.eq.s32.totalorder %s25, 1
      %p69 = por %p67, %p68
      %p71 = scmp.ne.s32.totalorder %s56, %s70
      %p72 = scmp.eq.s32.totalorder %s25, 0
      %p73 = por %p71, %p72
      %s75 = sadd.s32 %s74, 1
      %p78 = scmp.eq.s32.totalorder %s19, 1
      %p79 = scmp.ne.s32.totalorder %s74, %s76
      %p80 = scmp.eq.s32.totalorder %s19, 0
      %p81 = por %p79, %p80
      %p82 = scmp.ne.s32.totalorder %s74, %s76
      %p83 = scmp.eq.s32.totalorder %s24, 1
      %p84 = por %p82, %p83
      %p85 = scmp.ne.s32.totalorder %s76, %s77
      %p86 = scmp.eq.s32.totalorder %s24, 0
      %p87 = por %p85, %p86
      %p88 = scmp.ne.s32.totalorder %s76, %s77
      %p89 = scmp.eq.s32.totalorder %s25, 1
      %p90 = por %p88, %p89
      %p92 = scmp.ne.s32.totalorder %s77, %s91
      %p93 = scmp.eq.s32.totalorder %s25, 0
      %p94 = por %p92, %p93
      %s96 = sadd.s32 %s95, 1
      %p99 = scmp.eq.s32.totalorder %s19, 1
      %p100 = scmp.ne.s32.totalorder %s95, %s97
      %p101 = scmp.eq.s32.totalorder %s19, 0
      %p102 = por %p100, %p101
      %p103 = scmp.ne.s32.totalorder %s95, %s97
      %p104 = scmp.eq.s32.totalorder %s24, 1
      %p105 = por %p103, %p104
      %p106 = scmp.ne.s32.totalorder %s97, %s98
      %p107 = scmp.eq.s32.totalorder %s24, 0
      %p108 = por %p106, %p107
      %p109 = scmp.ne.s32.totalorder %s97, %s98
      %p110 = scmp.eq.s32.totalorder %s25, 1
      %p111 = por %p109, %p110
      %p113 = scmp.ne.s32.totalorder %s98, %s112
      %p114 = scmp.eq.s32.totalorder %s25, 0
      %p115 = por %p113, %p114
      %s117 = sadd.s32 %s116, 1
      %p120 = scmp.eq.s32.totalorder %s19, 1
      %p121 = scmp.ne.s32.totalorder %s116, %s118
      %p122 = scmp.eq.s32.totalorder %s19, 0
      %p123 = por %p121, %p122
      %p124 = scmp.ne.s32.totalorder %s116, %s118
      %p125 = scmp.eq.s32.totalorder %s24, 1
      %p126 = por %p124, %p125
      %p127 = scmp.ne.s32.totalorder %s118, %s119
      %p128 = scmp.eq.s32.totalorder %s24, 0
      %p129 = por %p127, %p128
      %p130 = scmp.ne.s32.totalorder %s118, %s119
      %p131 = scmp.eq.s32.totalorder %s25, 1
      %p132 = por %p130, %p131
      %p134 = scmp.ne.s32.totalorder %s119, %s133
      %p135 = scmp.eq.s32.totalorder %s25, 0
      %p136 = por %p134, %p135
      %s138 = sadd.s32 %s137, 1
      %p141 = scmp.eq.s32.totalorder %s19, 1
      %p142 = scmp.ne.s32.totalorder %s137, %s139
      %p143 = scmp.eq.s32.totalorder %s19, 0
      %p144 = por %p142, %p143
      %p145 = scmp.ne.s32.totalorder %s137, %s139
      %p146 = scmp.eq.s32.totalorder %s24, 1
      %p147 = por %p145, %p146
      %p148 = scmp.ne.s32.totalorder %s139, %s140
      %p149 = scmp.eq.s32.totalorder %s24, 0
      %p150 = por %p148, %p149
      %p151 = scmp.ne.s32.totalorder %s139, %s140
      %p152 = scmp.eq.s32.totalorder %s25, 1
      %p153 = por %p151, %p152
      %p155 = scmp.ne.s32.totalorder %s140, %s154
      %p156 = scmp.eq.s32.totalorder %s25, 0
      %p157 = por %p155, %p156
      %s159 = sadd.s32 %s158, 1
      %p162 = scmp.eq.s32.totalorder %s19, 1
      %p163 = scmp.ne.s32.totalorder %s158, %s160
      %p164 = scmp.eq.s32.totalorder %s19, 0
      %p165 = por %p163, %p164
      %p166 = scmp.ne.s32.totalorder %s158, %s160
      %p167 = scmp.eq.s32.totalorder %s24, 1
      %p168 = por %p166, %p167
      %p169 = scmp.ne.s32.totalorder %s160, %s161
      %p170 = scmp.eq.s32.totalorder %s24, 0
      %p171 = por %p169, %p170
      %p172 = scmp.ne.s32.totalorder %s160, %s161
      %p173 = scmp.eq.s32.totalorder %s25, 1
      %p174 = por %p172, %p173
      %p176 = scmp.ne.s32.totalorder %s161, %s175
      %p177 = scmp.eq.s32.totalorder %s25, 0
      %p178 = por %p176, %p177
      %s179 = ssub.s32 %s19, %s26
      %p180 = scmp.eq.s32.totalorder %s179, 0
      %s182 = sadd.s32 %s181, 1
      %s183 = scalar_select %p180, %s181, %s182
      %p186 = pneg %p180
      %p187 = scmp.eq.s32.totalorder %s19, 1
      %p188 = por %p186, %p187
      %p189 = scmp.ne.s32.totalorder %s181, %s184
      %p190 = scmp.eq.s32.totalorder %s19, 0
      %p191 = por %p189, %p190
      %p192 = scmp.ne.s32.totalorder %s181, %s184
      %p193 = scmp.eq.s32.totalorder %s24, 1
      %p194 = por %p192, %p193
      %p195 = scmp.ne.s32.totalorder %s184, %s185
      %p196 = scmp.eq.s32.totalorder %s24, 0
      %p197 = por %p195, %p196
      %p198 = scmp.ne.s32.totalorder %s184, %s185
      %p199 = scmp.eq.s32.totalorder %s25, 1
      %p200 = por %p198, %p199
      %p202 = scmp.ne.s32.totalorder %s185, %s201
      %p203 = scmp.eq.s32.totalorder %s25, 0
      %p204 = por %p202, %p203
      %p205 = scmp.le.s32.totalorder 1, %s19
      %p206 = scmp.lt.s32.totalorder %s19, 3
      %p207 = pnand %p205, %p206
      %p208 = pneg %p207
      // Predicated region
      $region9: #{tpu_custom_call.1} parent=5 // pred_check
        _
      $region10: #{tpu_custom_call.1} parent=5 // pred_check_branch
        %210 = sbr.rel (%p207) target = $region12
      $region11: #{tpu_custom_call.1} parent=5 // pred_region
        %s211 = ssub.s32 %s19, 1
        // Predicated region
        $region13: #{tpu_custom_call.1} parent=11 // pred_check
          %p212 = pneg %p66
        $region14: #{tpu_custom_call.1} parent=11 // pred_check_branch
          %214 = sbr.rel (%p212) target = $region16
        $region15: #{tpu_custom_call.1} parent=11 // pred_region
          _
        $region16: #{tpu_custom_call.1} parent=11 // pred_fallthru
          _
        // Predicated region
        $region17: #{tpu_custom_call.1} parent=11 // pred_check
          %p215 = pneg %p87
        $region18: #{tpu_custom_call.1} parent=11 // pred_check_branch
          %217 = sbr.rel (%p215) target = $region20
        $region19: #{tpu_custom_call.1} parent=11 // pred_region
          _
        $region20: #{tpu_custom_call.1} parent=11 // pred_fallthru
          _
        // Predicated region
        $region21: #{tpu_custom_call.1} parent=11 // pred_check
          %p218 = pneg %p108
        $region22: #{tpu_custom_call.1} parent=11 // pred_check_branch
          %220 = sbr.rel (%p218) target = $region24
        $region23: #{tpu_custom_call.1} parent=11 // pred_region
          _
        $region24: #{tpu_custom_call.1} parent=11 // pred_fallthru
          _
        // Predicated region
        $region25: #{tpu_custom_call.1} parent=11 // pred_check
          %p221 = pneg %p129
        $region26: #{tpu_custom_call.1} parent=11 // pred_check_branch
          %223 = sbr.rel (%p221) target = $region28
        $region27: #{tpu_custom_call.1} parent=11 // pred_region
          _
        $region28: #{tpu_custom_call.1} parent=11 // pred_fallthru
          _
        // Predicated region
        $region29: #{tpu_custom_call.1} parent=11 // pred_check
          %p224 = pneg %p150
        $region30: #{tpu_custom_call.1} parent=11 // pred_check_branch
          %226 = sbr.rel (%p224) target = $region32
        $region31: #{tpu_custom_call.1} parent=11 // pred_region
          _
        $region32: #{tpu_custom_call.1} parent=11 // pred_fallthru
          _
        // Predicated region
        $region33: #{tpu_custom_call.1} parent=11 // pred_check
          %p227 = pneg %p171
        $region34: #{tpu_custom_call.1} parent=11 // pred_check_branch
          %229 = sbr.rel (%p227) target = $region36
        $region35: #{tpu_custom_call.1} parent=11 // pred_region
          _
        $region36: #{tpu_custom_call.1} parent=11 // pred_fallthru
          _
      $region12: #{tpu_custom_call.1} parent=5 // pred_fallthru
        _
      %p230 = scmp.lt.s32.totalorder %s19, 2
      // Predicated region
      $region37: #{tpu_custom_call.1} parent=5 // pred_check
        %p231 = pneg %p230
      $region38: #{tpu_custom_call.1} parent=5 // pred_check_branch
        %233 = sbr.rel (%p231) target = $region40
      $region39: #{tpu_custom_call.1} parent=5 // pred_region
        // Predicated region
        $region41: #{tpu_custom_call.1} parent=39 // pred_check
          %p234 = pneg %p39
        $region42: #{tpu_custom_call.1} parent=39 // pred_check_branch
          %236 = sbr.rel (%p234) target = $region44
        $region43: #{tpu_custom_call.1} parent=39 // pred_region
          %s237 = sand.u32 %s29, 1
          %s238 = scalar_lea.sflag [#allocation3], %s237
          %s239 = sand.u32 %s29, 1
          %s240 = smul.addr %s239, 16
          %s241 = scalar_lea.vmem [#allocation2], %s240
          %243 = vsyncadd %s238, 0
          %s244 = smul.addr %s19, 2
          %s245 = smul.addr %s244, 8
          %s246 = scalar_lea.hbm %s0, %s245
          %s248 = sshll.u32 %s246, 4
          %s249 = int_to_ptr.hbm [resolvable:$true] %s248
          %s250 = sshll.u32 %s241, 4
          %s251 = int_to_ptr.vmem [resolvable:$true] %s250
          %253 = dma.hbm_to_vmem [thread:$0]  %s249, 256, %s251, %s238
        $region44: #{tpu_custom_call.1} parent=39 // pred_fallthru
          _
      $region40: #{tpu_custom_call.1} parent=5 // pred_fallthru
        _
      %p254 = scmp.le.s32.totalorder 1, %s19
      %p255 = scmp.lt.s32.totalorder %s19, 3
      %p256 = pnand %p254, %p255
      %p257 = pneg %p256
      // Predicated region
      $region45: #{tpu_custom_call.1} parent=5 // pred_check
        _
      $region46: #{tpu_custom_call.1} parent=5 // pred_check_branch
        %259 = sbr.rel (%p256) target = $region48
      $region47: #{tpu_custom_call.1} parent=5 // pred_region
        %s260 = ssub.s32 %s19, 1
        %s261 = sand.u32 %s32, 1
        %s262 = scalar_lea.sflag [#allocation3], %s261
        %s263 = sand.u32 %s32, 1
        %s264 = smul.addr %s263, 16
        %s265 = scalar_lea.vmem [#allocation2], %s264
        // Predicated region
        $region49: #{tpu_custom_call.1} parent=47 // pred_check
          %p266 = pneg %p45
        $region50: #{tpu_custom_call.1} parent=47 // pred_check_branch
          %268 = sbr.rel (%p266) target = $region52
        $region51: #{tpu_custom_call.1} parent=47 // pred_region
          %270 = dma.done %s262, 256
        $region52: #{tpu_custom_call.1} parent=47 // pred_fallthru
          _
        %s271 = sand.u32 %s32, 1
        %s272 = scalar_lea.sflag [#allocation3], %s271
        %s273 = sand.u32 %s32, 1
        %s274 = smul.addr %s273, 16
        %s275 = scalar_lea.vmem [#allocation2], %s274
        %p276 = pneg %p45
        %p277 = pneg %p42
        %p278 = pneg %p66
        %p279 = pneg %p63
        %p280 = pneg %p87
        %p281 = pneg %p84
        %p282 = pneg %p108
        %p283 = pneg %p105
        %p284 = pneg %p129
        %p285 = pneg %p126
        %p286 = pneg %p150
        %p287 = pneg %p147
        %p288 = pneg %p171
        %p289 = pneg %p168
        %p290 = pneg %p197
        %p291 = pneg %p194
        %s292 = sand.u32 %s184, 1
        %s293 = scalar_lea.sflag [#allocation4], %s292
        %s294 = sand.u32 %s184, 1
        %s295 = smul.addr %s294, 16
        %s296 = scalar_lea.vmem [#allocation5], %s295
        %v298 = vld [vmem:[%s265] sm:$0xff]
        %v299 = vld [vmem:[%s265 + $0x8] sm:$0xff]
        %v300 = vld [vmem:[%s1] sm:$0x3]
        %v301 = vpack.c.bf16 %v298, %v298
        %v302 = vpack.c.bf16 %v299, %v299
        %v303 = vld [vmem:[%s4] sm:$0xf]
        %305 = vset.pattern.permute.xlu0 0
        %306 = vperm.xlu0 %305, %v303
        %v307 = vpop.permute.xlu0 %306
        %vm309 = vcmask 64512
        %v311 = vsel %vm309, %v300, 0
        %vm313 = vcmask 1043456
        %v315 = vsel %vm313, %v301, 0
        %v318 = vsel %vm313, %v302, 0
        %320 = vmatpush.bf16.msra.mxu0 0
        %321 = vmatpush.bf16.msra.mxu0 0
        %322 = vmatpush.bf16.msra.mxu0 0
        %323 = vmatpush.bf16.msra.mxu0 0
        %324 = vmatpush.bf16.msra.mxu0 0
        %325 = vmatpush.bf16.msra.mxu0 0
        %326 = vmatpush.bf16.msra.mxu0 0
        %327 = vmatpush.bf16.msra.mxu0 %v315
        %328 = vmatmul.bf16.gmra.mxu0 %v311
        %v329 = vpop.f32.mrf.mxu0
        %v330 = vadd.f32 %v307, %v329
        %v331 = vpop.f32.mrf.mxu0
        %332 = vdwg.mxu0
        %333 = vmatpush.bf16.msra.mxu0 0
        %334 = vmatpush.bf16.msra.mxu0 0
        %335 = vmatpush.bf16.msra.mxu0 0
        %336 = vmatpush.bf16.msra.mxu0 0
        %337 = vmatpush.bf16.msra.mxu0 0
        %338 = vmatpush.bf16.msra.mxu0 0
        %339 = vmatpush.bf16.msra.mxu0 0
        %340 = vmatpush.bf16.msra.mxu0 %v318
        %341 = vmatmul.bf16.gmra.mxu0 %v311
        %v342 = vpop.f32.mrf.mxu0
        %v343 = vadd.f32 %v307, %v342
        %v344 = vpop.f32.mrf.mxu0
        %345 = vdwg.mxu0
        %v346 = vmax.f32 %v330, 0.0
        %v347 = vmax.f32 %v343, 0.0
        %v348 = vlaneseq
        %v349 = vand.u32 %v348, 127
        %v350 = vadd.s32 %v349, 128
        %vm351 = vcmp.lt.s32.totalorder %v349, 0
        %v352 = vsub.s32 0, %v349
        %v353 = vsel %vm351, %v352, %v349
        %v354 = vshrl.u32 %v353, 4
        %v355 = vand.u32 %v353, 15
        %v356 = vsub.s32 0, %v355
        %v357 = vsel %vm351, %v356, %v355
        %vm358 = vcmp.lt.s32.totalorder %v350, 0
        %v359 = vsub.s32 0, %v350
        %v360 = vsel %vm358, %v359, %v350
        %v361 = vshrl.u32 %v360, 4
        %v362 = vand.u32 %v360, 15
        %v363 = vsub.s32 0, %v362
        %v364 = vsel %vm358, %v363, %v362
        %vm365 = vcmp.ne.s32.totalorder %v357, 0
        %vm366 = vcmp.ne.s32.totalorder %v364, 0
        %vm367 = vcmp.lt.s32.totalorder %v357, 0
        %vm368 = vcmp.lt.s32.totalorder %v364, 0
        %vm369 = vmand %vm367, %vm365
        %vm370 = vmand %vm368, %vm366
        %v371 = vadd.s32 %v357, 16
        %v372 = vadd.s32 %v364, 16
        %v373 = vsel %vm369, %v371, %v357
        %v374 = vsel %vm370, %v372, %v364
        %vm375 = vcmp.ge.s32.totalorder %v373, 1
        %vm376 = vcmp.ge.s32.totalorder %v374, 1
        %vm377 = vcmp.le.s32.totalorder %v373, 14
        %vm378 = vcmp.le.s32.totalorder %v374, 14
        %381 = vrot.lane.b32.xlu0 %v346, 17
        %v382 = vpop.permute.xlu0 %381
        %383 = vrot.lane.b32.xlu0 %v347, 17
        %v384 = vpop.permute.xlu0 %383
        %vm385 = vcmask 138240
        %v386 = vsel %vm385, %v382, %v384
        %v389 = vsel %vm385, 0.0, %v382
        %v390 = vsel %vm375, %v389, 0.0
        %v391 = vsel %vm376, %v386, 0.0
        %392 = vrot.lane.b32.xlu0 %v346, 16
        %v393 = vpop.permute.xlu0 %392
        %394 = vrot.lane.b32.xlu0 %v347, 16
        %v395 = vpop.permute.xlu0 %394
        %vm396 = vcmask 130048
        %v397 = vsel %vm396, %v393, %v395
        %v399 = vsel %vm396, 0.0, %v393
        %400 = vrot.lane.b32.xlu0 %v346, 15
        %v401 = vpop.permute.xlu0 %400
        %402 = vrot.lane.b32.xlu0 %v347, 15
        %v403 = vpop.permute.xlu0 %402
        %vm404 = vcmask 121856
        %v405 = vsel %vm404, %v401, %v403
        %v408 = vsel %vm404, 0.0, %v401
        %v409 = vsel %vm377, %v408, 0.0
        %v410 = vsel %vm378, %v405, 0.0
        %411 = vrot.lane.b32.xlu0 %v346, 1
        %v412 = vpop.permute.xlu0 %411
        %413 = vrot.lane.b32.xlu0 %v347, 1
        %v414 = vpop.permute.xlu0 %413
        %vm415 = vcmask 7168
        %v416 = vsel %vm415, %v412, %v414
        %v419 = vsel %vm415, 0.0, %v412
        %v420 = vsel %vm375, %v419, 0.0
        %v421 = vsel %vm376, %v416, 0.0
        %422 = vrot.lane.b32.xlu0 %v346, 127
        %v423 = vpop.permute.xlu0 %422
        %424 = vrot.lane.b32.xlu0 %v347, 127
        %v425 = vpop.permute.xlu0 %424
        %vm426 = vcmask 1039360
        %v427 = vsel %vm426, %v423, %v425
        %v430 = vsel %vm426, %v425, 0.0
        %v431 = vsel %vm377, %v427, 0.0
        %v432 = vsel %vm378, %v430, 0.0
        %433 = vrot.lane.b32.xlu0 %v346, 113
        %v434 = vpop.permute.xlu0 %433
        %435 = vrot.lane.b32.xlu0 %v347, 113
        %v436 = vpop.permute.xlu0 %435
        %vm437 = vcmask 924672
        %v438 = vsel %vm437, %v434, %v436
        %v441 = vsel %vm437, %v436, 0.0
        %v442 = vsel %vm375, %v438, 0.0
        %v443 = vsel %vm376, %v441, 0.0
        %444 = vrot.lane.b32.xlu0 %v346, 112
        %v445 = vpop.permute.xlu0 %444
        %446 = vrot.lane.b32.xlu0 %v347, 112
        %v447 = vpop.permute.xlu0 %446
        %vm448 = vcmask 916480
        %v449 = vsel %vm448, %v445, %v447
        %v451 = vsel %vm448, %v447, 0.0
        %452 = vrot.lane.b32.xlu0 %v346, 111
        %v453 = vpop.permute.xlu0 %452
        %454 = vrot.lane.b32.xlu0 %v347, 111
        %v455 = vpop.permute.xlu0 %454
        %vm456 = vcmask 908288
        %v457 = vsel %vm456, %v453, %v455
        %v460 = vsel %vm456, %v455, 0.0
        %v461 = vsel %vm377, %v457, 0.0
        %v462 = vsel %vm378, %v460, 0.0
        %v464 = vrot.slane %v399, 4
        %v465 = vrot.slane %v397, 4
        %v470 = vrot.slane %v420, 4
        %v471 = vrot.slane %v421, 4
        %v476 = vrot.slane %v431, 4
        %v477 = vrot.slane %v432, 4
        %v481 = vrot.slane %v449, 4
        %v482 = vrot.slane %v451, 4
        %v485 = vsel %vm313, %v390, %v464
        %v486 = vsel %vm313, %v391, %v465
        %v487 = vsel %vm313, %v409, %v470
        %v488 = vsel %vm313, %v410, %v471
        %v489 = vsel %vm313, %v346, %v476
        %v490 = vsel %vm313, %v347, %v477
        %v491 = vsel %vm313, %v442, %v481
        %v492 = vsel %vm313, %v443, %v482
        %v493 = vpack.c.bf16 %v487, %v485
        %v494 = vpack.c.bf16 %v488, %v486
        %v495 = vpack.c.bf16 %v491, %v489
        %v496 = vpack.c.bf16 %v492, %v490
        %v497 = vpack.c.bf16 %v461, %v461
        %v498 = vpack.c.bf16 %v462, %v462
        %v499 = vld [vmem:[%s2] sm:$0x3]
        %v500 = vld [vmem:[%s5] sm:$0xf]
        %502 = vset.pattern.permute.xlu0 0
        %503 = vperm.xlu0 %502, %v500
        %v504 = vpop.permute.xlu0 %503
        %vm506 = vcmask 293888
        %v508 = vsel %vm506, %v499, 0
        %vm510 = vcmask 1041408
        %v512 = vsel %vm510, %v497, 0
        %v515 = vsel %vm510, %v498, 0
        %517 = vmatpush.bf16.msra.mxu0 0
        %518 = vmatpush.bf16.msra.mxu0 0
        %519 = vmatpush.bf16.msra.mxu0 0
        %520 = vmatpush.bf16.msra.mxu0 0
        %521 = vmatpush.bf16.msra.mxu0 0
        %522 = vmatpush.bf16.msra.mxu0 %v512
        %523 = vmatpush.bf16.msra.mxu0 %v495
        %524 = vmatpush.bf16.msra.mxu0 %v493
        %525 = vmatmul.bf16.gmra.mxu0 %v508
        %v526 = vpop.f32.mrf.mxu0
        %v527 = vadd.f32 %v504, %v526
        %v528 = vpop.f32.mrf.mxu0
        %529 = vdwg.mxu0
        %530 = vmatpush.bf16.msra.mxu0 0
        %531 = vmatpush.bf16.msra.mxu0 0
        %532 = vmatpush.bf16.msra.mxu0 0
        %533 = vmatpush.bf16.msra.mxu0 0
        %534 = vmatpush.bf16.msra.mxu0 0
        %535 = vmatpush.bf16.msra.mxu0 %v515
        %536 = vmatpush.bf16.msra.mxu0 %v496
        %537 = vmatpush.bf16.msra.mxu0 %v494
        %538 = vmatmul.bf16.gmra.mxu0 %v508
        %v539 = vpop.f32.mrf.mxu0
        %v540 = vadd.f32 %v504, %v539
        %v541 = vpop.f32.mrf.mxu0
        %542 = vdwg.mxu0
        %v543 = vmax.f32 %v527, 0.0
        %v544 = vmax.f32 %v540, 0.0
        %v545 = vld [vmem:[%s3] sm:$0xf]
        %v546 = vpack.c.bf16 %v543, %v543
        %v547 = vpack.c.bf16 %v544, %v544
        %v548 = vld [vmem:[%s6] sm:$0xff]
        %550 = vset.pattern.permute.xlu0 0
        %551 = vperm.xlu0 %550, %v548
        %v552 = vpop.permute.xlu0 %551
        %vm554 = vcmask 31744
        %v556 = vsel %vm554, %v545, 0
        %v559 = vsel %vm510, %v546, 0
        %v562 = vsel %vm510, %v547, 0
        %564 = vmatpush.bf16.msra.mxu0 0
        %565 = vmatpush.bf16.msra.mxu0 0
        %566 = vmatpush.bf16.msra.mxu0 0
        %567 = vmatpush.bf16.msra.mxu0 0
        %568 = vmatpush.bf16.msra.mxu0 0
        %569 = vmatpush.bf16.msra.mxu0 0
        %570 = vmatpush.bf16.msra.mxu0 0
        %571 = vmatpush.bf16.msra.mxu0 %v559
        %572 = vmatmul.bf16.gmra.mxu0 %v556
        %v573 = vpop.f32.mrf.mxu0
        %v574 = vadd.f32 %v552, %v573
        %v575 = vpop.f32.mrf.mxu0
        %576 = vdwg.mxu0
        %577 = vmatpush.bf16.msra.mxu0 0
        %578 = vmatpush.bf16.msra.mxu0 0
        %579 = vmatpush.bf16.msra.mxu0 0
        %580 = vmatpush.bf16.msra.mxu0 0
        %581 = vmatpush.bf16.msra.mxu0 0
        %582 = vmatpush.bf16.msra.mxu0 0
        %583 = vmatpush.bf16.msra.mxu0 0
        %584 = vmatpush.bf16.msra.mxu0 %v562
        %585 = vmatmul.bf16.gmra.mxu0 %v556
        %v586 = vpop.f32.mrf.mxu0
        %v587 = vadd.f32 %v552, %v586
        %v588 = vpop.f32.mrf.mxu0
        %589 = vdwg.mxu0
        %v590 = vadd.f32 %v574, %v298
        %v591 = vadd.f32 %v587, %v299
        %v592 = vmax.f32 %v590, 0.0
        %v593 = vmax.f32 %v591, 0.0
        %594 = vst [vmem:[%s296] sm:$0xff] %v592
        %595 = vst [vmem:[%s296 + $0x8] sm:$0xff] %v593
        %s596 = sand.u32 %s184, 1
        %s597 = scalar_lea.sflag [#allocation4], %s596
        %s598 = sand.u32 %s184, 1
        %s599 = smul.addr %s598, 16
        %s600 = scalar_lea.vmem [#allocation5], %s599
        // Predicated region
        $region53: #{tpu_custom_call.1} parent=47 // pred_check
          %p601 = pneg %p194
        $region54: #{tpu_custom_call.1} parent=47 // pred_check_branch
          %603 = sbr.rel (%p601) target = $region56
        $region55: #{tpu_custom_call.1} parent=47 // pred_region
          %605 = vsyncadd %s597, 0
          %s606 = smul.addr %s24, 2
          %s607 = smul.addr %s606, 8
          %s608 = scalar_lea.hbm %s7, %s607
          %s610 = sshll.u32 %s600, 4
          %s611 = int_to_ptr.vmem [resolvable:$true] %s610
          %s612 = sshll.u32 %s608, 4
          %s613 = int_to_ptr.hbm [resolvable:$true] %s612
          %615 = dma.vmem_to_hbm [thread:$0]  %s611, 256, %s613, %s597
        $region56: #{tpu_custom_call.1} parent=47 // pred_fallthru
          _
      $region48: #{tpu_custom_call.1} parent=5 // pred_fallthru
        _
      %p616 = scmp.le.s32.totalorder 2, %s19
      // Predicated region
      $region57: #{tpu_custom_call.1} parent=5 // pred_check
        %p617 = pneg %p616
      $region58: #{tpu_custom_call.1} parent=5 // pred_check_branch
        %619 = sbr.rel (%p617) target = $region60
      $region59: #{tpu_custom_call.1} parent=5 // pred_region
        %s620 = ssub.s32 %s19, 2
        // Predicated region
        $region61: #{tpu_custom_call.1} parent=59 // pred_check
          %p621 = pneg %p200
        $region62: #{tpu_custom_call.1} parent=59 // pred_check_branch
          %623 = sbr.rel (%p621) target = $region64
        $region63: #{tpu_custom_call.1} parent=59 // pred_region
          %s624 = sand.u32 %s185, 1
          %s625 = scalar_lea.sflag [#allocation4], %s624
          %s626 = sand.u32 %s185, 1
          %s627 = smul.addr %s626, 16
          %s628 = scalar_lea.vmem [#allocation5], %s627
          %630 = dma.done %s625, 256
        $region64: #{tpu_custom_call.1} parent=59 // pred_fallthru
          _
      $region60: #{tpu_custom_call.1} parent=5 // pred_fallthru
        _
    $region6: #{tpu_custom_call.1} parent=1 // loop_footer
      %s23 = sadd.s32 1, %s19
    $region7: #{tpu_custom_call.1} parent=1 // loop_footer_branch
      %18 = sbr.rel target = $region3
    $region8: #{tpu_custom_call.1} parent=1 // loop_exit
      _
    %631 = vsyncpa [#allocation3], 1
    %s632 = scalar_lea.sflag [#allocation3], 1
    %633 = vsyncpa %s632, 1
    %634 = vsyncpa [#allocation4], 1
    %s635 = scalar_lea.sflag [#allocation4], 1
    %636 = vsyncpa %s635, 1

</llo_original>
